<compile_context>
chip_gen: v5e
topology: v5e:2x2
jax: 0.10.0
libtpu: 0.0.40
codegen_flags: <defaults>
</compile_context>

<pallas_src>
import functools

import numpy as np
import jax
import jax.numpy as jnp
from jax.experimental import pallas as pl
from jax.experimental.pallas import tpu as pltpu

jax.config.update("jax_default_matmul_precision", "highest")

H_PAD = 8      # padded history rows (sublane multiple)
LANE = 128     # TPU lane width


def _round_up(n, m):
    return ((n + m - 1) // m) * m


# ------------------------------- Pallas kernel -------------------------------

def _policy_kernel(scal_ref, x_ref, w_ref, b_ref, mask_ref, out_ref, h2_ref,
                   *, d_in_pad, hc, p_pad):
    # scal_ref : SMEM (2,) int32            [empty_flag, true_history_len]
    # x_ref    : VMEM (H_PAD, d_in_pad)     zero-padded encoder inputs
    # w_ref    : VMEM (R, 2*hc + p_pad)     W1 | W23 | W4 (zero padded, tile-aligned cols)
    # b_ref    : VMEM (8, CB)               rows 0..3: b1, b23, ew_h2, b4 (zero padded)
    # mask_ref : VMEM (1, p_pad)            1.0 at valid action indices
    # h2_ref   : VMEM (1, hc) scratch       lane-dense hidden activation

    bias = b_ref[...]
    b1 = bias[0:1, 0:hc]
    b23 = bias[1:2, 0:hc]
    ew_h2 = bias[2:3, 0:hc]
    b4 = bias[3:4, 0:p_pad]

    @pl.when(scal_ref[0] == 0)
    def _encode():
        # Encoder first layer over all (padded) history rows.
        x = x_ref[...]                                              # (H_PAD, d_in_pad)
        w1 = w_ref[0:d_in_pad, 0:hc]
        h1 = jnp.maximum(
            jnp.dot(x, w1, preferred_element_type=jnp.float32) + b1, 0.0)
        # Padded rows equal relu(b1) != 0 -> mask them, then mean over the true rows.
        h_true = scal_ref[1]
        row_ids = jax.lax.broadcasted_iota(jnp.int32, h1.shape, 0)
        h1 = jnp.where(row_ids < h_true, h1, 0.0)
        h1_mean = (jnp.sum(h1, axis=0, keepdims=True)
                   * (1.0 / h_true.astype(jnp.float32)))            # mean is linear
        # Fused encoder fc2 + policy fc1: relu(mean(h1) @ (W2@W3) + (b2@W3 + b3)).
        w23 = w_ref[0:hc, hc:2 * hc]
        h2_ref[...] = jnp.maximum(
            jnp.dot(h1_mean, w23, preferred_element_type=jnp.float32) + b23, 0.0)

    @pl.when(scal_ref[0] != 0)
    def _empty():
        h2_ref[...] = ew_h2          # relu(empty_weight @ W3 + b3), precomputed on host

    # --- policy output layer ---
    w4 = w_ref[0:hc, 2 * hc:2 * hc + p_pad]
    logits = jnp.dot(h2_ref[...], w4, preferred_element_type=jnp.float32) + b4

    # --- masked softmax over the valid action indices ---
    # TODO(synk): masked_softmax is not defined in the reference source; assuming softmax
    # restricted to mask_index positions (probability 0 elsewhere; requires >=1 valid action).
    masked = jnp.where(mask_ref[...] > 0.0, logits, -1e30)
    m = jnp.max(masked, axis=-1, keepdims=True)
    e = jnp.exp(masked - m)                                          # underflows to 0 off-mask
    inv = pl.reciprocal(jnp.sum(e, axis=-1, keepdims=True), approx=False)
    out_ref[...] = e * inv                                           # lane-dense store


def _pallas_policy_call(scal, x, w_slab, b_slab, mask, *, d_in_pad, hc, p_pad):
    kernel = functools.partial(_policy_kernel, d_in_pad=d_in_pad, hc=hc, p_pad=p_pad)
    smem = pl.BlockSpec(memory_space=pltpu.MemorySpace.SMEM)
    vmem = pl.BlockSpec(memory_space=pltpu.MemorySpace.VMEM)
    return pl.pallas_call(
        kernel,
        out_shape=jax.ShapeDtypeStruct((1, p_pad), jnp.float32),
        in_specs=[smem, vmem, vmem, vmem, vmem],
        out_specs=vmem,
        scratch_shapes=[pltpu.VMEM((1, hc), jnp.float32)],
    )(scal, x, w_slab, b_slab, mask)


# ----------------------------- parameter setup ------------------------------

def init_params(key, num_projects, len_category, len_sub_category, len_industry, dim):
    ks = jax.random.split(key, 12)
    d_in = 3 * dim + 3
    s = 0.05
    return {
        "cat_emb": jax.random.normal(ks[0], (len_category, dim), jnp.float32) * s,
        "sub_emb": jax.random.normal(ks[1], (len_sub_category, dim), jnp.float32) * s,
        "ind_emb": jax.random.normal(ks[2], (len_industry, dim), jnp.float32) * s,
        # ProjectEncoder.fc (weights stored (in, out), transposed vs PyTorch)
        "w1": jax.random.normal(ks[3], (d_in, 4 * dim), jnp.float32) * s,
        "b1": jax.random.normal(ks[4], (1, 4 * dim), jnp.float32) * s,
        "w2": jax.random.normal(ks[5], (4 * dim, dim), jnp.float32) * s,
        "b2": jax.random.normal(ks[6], (1, dim), jnp.float32) * s,
        # PolicyNet.empty_weight
        "empty_weight": jax.random.normal(ks[7], (1, dim), jnp.float32) * s,
        # PolicyNet.mlp
        "w3": jax.random.normal(ks[8], (dim, 4 * dim), jnp.float32) * s,
        "b3": jax.random.normal(ks[9], (1, 4 * dim), jnp.float32) * s,
        "w4": jax.random.normal(ks[10], (4 * dim, num_projects), jnp.float32) * s,
        "b4": jax.random.normal(ks[11], (1, num_projects), jnp.float32) * s,
    }


def prepare_padded_params(params, num_projects, dim):
    """Fuse W2·W3 and pack everything into two zero-padded, tile-aligned slabs (done once)."""
    d_in = 3 * dim + 3
    hidden = 4 * dim
    d_in_pad = _round_up(d_in, LANE)
    hc = _round_up(hidden, LANE)
    p_pad = _round_up(num_projects, LANE)
    rows = max(d_in_pad, hc)
    cb = max(hc, p_pad)

    # Algebraic fusion (no nonlinearity between encoder fc2 and policy fc1).
    w23 = params["w2"] @ params["w3"]                               # (hidden, hidden)
    b23 = params["b2"] @ params["w3"] + params["b3"]                # (1, hidden)
    ew_h2 = jnp.maximum(params["empty_weight"] @ params["w3"] + params["b3"], 0.0)

    w_slab = jnp.zeros((rows, 2 * hc + p_pad), jnp.float32)
    w_slab = w_slab.at[:d_in, 0:hidden].set(params["w1"])
    w_slab = w_slab.at[:hidden, hc:hc + hidden].set(w23)
    w_slab = w_slab.at[:hidden, 2 * hc:2 * hc + num_projects].set(params["w4"])

    b_slab = jnp.zeros((8, cb), jnp.float32)
    b_slab = b_slab.at[0, 0:hidden].set(params["b1"][0])
    b_slab = b_slab.at[1, 0:hidden].set(b23[0])
    b_slab = b_slab.at[2, 0:hidden].set(ew_h2[0])
    b_slab = b_slab.at[3, 0:num_projects].set(params["b4"][0])

    return {
        "cat_emb": params["cat_emb"],
        "sub_emb": params["sub_emb"],
        "ind_emb": params["ind_emb"],
        "w_slab": w_slab,
        "b_slab": b_slab,
    }


# ------------------------------ forward pass --------------------------------

@functools.partial(jax.jit, static_argnames=("num_projects", "dim"))
def _forward_device(pp, scal, disc_idx, cont, mask, num_projects, dim):
    # Embedding gathers + concat stay as XLA ops fused inside this same jit (single dispatch);
    # kept outside the kernel to avoid risky in-kernel dynamic gathers at these tiny sizes.
    cat_e = jnp.take(pp["cat_emb"], disc_idx[:, 0], axis=0)        # (H_PAD, dim)
    sub_e = jnp.take(pp["sub_emb"], disc_idx[:, 1], axis=0)
    ind_e = jnp.take(pp["ind_emb"], disc_idx[:, 2], axis=0)
    x = jnp.concatenate([cat_e, sub_e, ind_e, cont], axis=-1)      # (H_PAD, 3*dim+3)

    d_in_pad = _round_up(3 * dim + 3, LANE)
    hc = _round_up(4 * dim, LANE)
    p_pad = _round_up(num_projects, LANE)
    x = jnp.pad(x, ((0, 0), (0, d_in_pad - x.shape[1])))           # lane-pad to 128

    out = _pallas_policy_call(scal, x, pp["w_slab"], pp["b_slab"], mask,
                              d_in_pad=d_in_pad, hc=hc, p_pad=p_pad)
    return out[0, :num_projects]                                   # (num_projects,)


def policy_net_forward(padded_params, worker_history, action_list, num_projects, dim):
    """worker_history: list of ((category, sub_category, industry),
                                (average_score, client_feedback, total_awards_and_tips))
       action_list   : list of tuples; action[0] is the valid project index."""
    H = len(worker_history)
    assert H <= H_PAD, f"history length {H} exceeds padded capacity {H_PAD}"
    p_pad = _round_up(num_projects, LANE)

    # cheap numpy host glue -> fixed padded shapes, single device transfer each
    disc = np.zeros((H_PAD, 3), np.int32)
    cont = np.zeros((H_PAD, 3), np.float32)
    for i, (d, c) in enumerate(worker_history):
        disc[i] = d
        cont[i] = c
    mask_np = np.zeros((1, p_pad), np.float32)
    for a in action_list:
        mask_np[0, int(a[0])] = 1.0

    scal = np.asarray([1 if H == 0 else 0, max(H, 1)], np.int32)   # [flag, true H]

    return _forward_device(padded_params, jnp.asarray(scal),
                           jnp.asarray(disc), jnp.asarray(cont), jnp.asarray(mask_np),
                           num_projects, dim)


# ------------------------------ reference path ------------------------------

def _reference_forward(params, worker_history, action_list, num_projects, dim):
    if len(worker_history) == 0:
        worker = params["empty_weight"][0]
    else:
        outs = []
        for (disc, cont) in worker_history:
            cat, sub, ind = disc
            avg, fb, tips = cont
            fc_in = jnp.concatenate([
                params["cat_emb"][cat], params["sub_emb"][sub], params["ind_emb"][ind],
                jnp.asarray([avg], jnp.float32), jnp.asarray([fb], jnp.float32),
                jnp.asarray([tips], jnp.float32)])
            h = jnp.maximum(fc_in @ params["w1"] + params["b1"][0], 0.0)
            outs.append(h @ params["w2"] + params["b2"][0])
        worker = jnp.mean(jnp.stack(outs, 0), axis=0)
    h2 = jnp.maximum(worker @ params["w3"] + params["b3"][0], 0.0)
    logits = h2 @ params["w4"] + params["b4"][0]
    mask_index = jnp.asarray([a[0] for a in action_list], jnp.int32)
    mask = jnp.zeros((num_projects,), jnp.float32).at[mask_index].set(1.0)
    ml = jnp.where(mask > 0, logits, -1e30)
    e = jnp.exp(ml - jnp.max(ml)) * mask
    return e / jnp.sum(e)


if __name__ == "__main__":
    num_projects = 8
    len_category, len_sub_category, len_industry = 10, 12, 14
    dim = 32

    root = jax.random.PRNGKey(0)
    k_params, k_inputs = jax.random.split(root)

    params = init_params(k_params, num_projects,
                         len_category, len_sub_category, len_industry, dim)
    padded_params = prepare_padded_params(params, num_projects, dim)

    cont_vals = np.asarray(jax.random.uniform(k_inputs, (3, 3), jnp.float32))
    worker_history = [
        ((1, 3, 5), (float(cont_vals[0, 0]), float(cont_vals[0, 1]), float(cont_vals[0, 2]))),
        ((4, 7, 2), (float(cont_vals[1, 0]), float(cont_vals[1, 1]), float(cont_vals[1, 2]))),
        ((9, 0, 13), (float(cont_vals[2, 0]), float(cont_vals[2, 1]), float(cont_vals[2, 2]))),
    ]
    action_list = [(0, "a"), (3, "b"), (5, "c")]

    # non-empty history path
    out = policy_net_forward(padded_params, worker_history, action_list, num_projects, dim)
    out = jax.block_until_ready(out)
    ref = _reference_forward(params, worker_history, action_list, num_projects, dim)
    assert out.shape == (num_projects,)
    assert jnp.allclose(out, ref, atol=1e-4, rtol=1e-4), (out, ref)

    # empty history path (same shapes -> no recompile; exercises the pl.when empty branch)
    out_e = policy_net_forward(padded_params, [], action_list, num_projects, dim)
    out_e = jax.block_until_ready(out_e)
    ref_e = _reference_forward(params, [], action_list, num_projects, dim)
    assert jnp.allclose(out_e, ref_e, atol=1e-4, rtol=1e-4), (out_e, ref_e)

    print("KERNEL_OK")
</pallas_src>

<mosaic_0001>
module attributes {stable_mosaic.version = 11 : i64} {
  func.func @_policy_kernel(%arg0: memref<2xi32, #tpu.memory_space<smem>>, %arg1: memref<8x128xf32, #tpu.memory_space<vmem>>, %arg2: memref<128x384xf32, #tpu.memory_space<vmem>>, %arg3: memref<8x128xf32, #tpu.memory_space<vmem>>, %arg4: memref<1x128xf32, #tpu.memory_space<vmem>>, %arg5: memref<1x128xf32, #tpu.memory_space<vmem>>, %arg6: memref<1x128xf32, #tpu.memory_space<vmem>>) attributes {dimension_semantics = [], scalar_prefetch = 0 : i64, scratch_operands = 1 : i64, tpu.core_type = #tpu.core_type<tc>} {
    %c0 = arith.constant 0 : index
    %c0_0 = arith.constant 0 : index
    %0 = vector.load %arg3[%c0, %c0_0] : memref<8x128xf32, #tpu.memory_space<vmem>>, vector<8x128xf32>
    %1 = vector.extract_strided_slice %0 {offsets = [0, 0], sizes = [1, 128], strides = [1, 1]} : vector<8x128xf32> to vector<1x128xf32>
    %2 = vector.extract_strided_slice %0 {offsets = [1, 0], sizes = [1, 128], strides = [1, 1]} : vector<8x128xf32> to vector<1x128xf32>
    %3 = vector.extract_strided_slice %0 {offsets = [2, 0], sizes = [1, 128], strides = [1, 1]} : vector<8x128xf32> to vector<1x128xf32>
    %4 = vector.extract_strided_slice %0 {offsets = [3, 0], sizes = [1, 128], strides = [1, 1]} : vector<8x128xf32> to vector<1x128xf32>
    %c0_1 = arith.constant 0 : index
    %5 = memref.load %arg0[%c0_1] : memref<2xi32, #tpu.memory_space<smem>>
    %c0_i32 = arith.constant 0 : i32
    %6 = arith.cmpi eq, %5, %c0_i32 : i32
    %7 = arith.extui %6 : i1 to i32
    %c0_i32_2 = arith.constant 0 : i32
    %8 = arith.cmpi ne, %7, %c0_i32_2 : i32
    scf.if %8 {
      %c0_17 = arith.constant 0 : index
      %c0_18 = arith.constant 0 : index
      %33 = vector.load %arg1[%c0_17, %c0_18] : memref<8x128xf32, #tpu.memory_space<vmem>>, vector<8x128xf32>
      %c0_19 = arith.constant 0 : index
      %c0_20 = arith.constant 0 : index
      %34 = vector.load %arg2[%c0_19, %c0_20] : memref<128x384xf32, #tpu.memory_space<vmem>>, vector<128x128xf32>
      %cst_21 = arith.constant dense<0.000000e+00> : vector<8x128xf32>
      %35 = tpu.matmul %33, %34, %cst_21 {dimension_numbers = #tpu.dot_dimension_numbers<[1], [0], [0], [1], [0, 0, 1, 1], [], []>, precision = #tpu.contract_precision<fp32>} : vector<8x128xf32>, vector<128x128xf32>, vector<8x128xf32> -> vector<8x128xf32>
      %36 = vector.broadcast %1 : vector<1x128xf32> to vector<8x128xf32>
      %37 = arith.addf %35, %36 : vector<8x128xf32>
      %cst_22 = arith.constant 0.000000e+00 : f32
      %38 = vector.broadcast %cst_22 : f32 to vector<8x128xf32>
      %39 = arith.maximumf %37, %38 : vector<8x128xf32>
      %c1 = arith.constant 1 : index
      %40 = memref.load %arg0[%c1] : memref<2xi32, #tpu.memory_space<smem>>
      %41 = tpu.iota {dimensions = array<i32: 0>} : vector<8x128xi32>
      %42 = vector.broadcast %40 : i32 to vector<8x128xi32>
      %43 = arith.cmpi slt, %41, %42 : vector<8x128xi32>
      %cst_23 = arith.constant 0.000000e+00 : f32
      %44 = vector.broadcast %cst_23 : f32 to vector<8x128xf32>
      %45 = arith.select %43, %39, %44 : vector<8x128xi1>, vector<8x128xf32>
      %cst_24 = arith.constant dense<0.000000e+00> : vector<128xf32>
      %46 = vector.multi_reduction <add>, %45, %cst_24 [0] : vector<8x128xf32> to vector<128xf32>
      %47 = vector.shape_cast %46 : vector<128xf32> to vector<1x128xf32>
      %48 = arith.sitofp %40 : i32 to f32
      %cst_25 = arith.constant 1.000000e+00 : f32
      %49 = arith.divf %cst_25, %48 : f32
      %50 = vector.broadcast %49 : f32 to vector<1x128xf32>
      %51 = arith.mulf %47, %50 : vector<1x128xf32>
      %c0_26 = arith.constant 0 : index
      %c128 = arith.constant 128 : index
      %52 = vector.load %arg2[%c0_26, %c128] : memref<128x384xf32, #tpu.memory_space<vmem>>, vector<128x128xf32>
      %cst_27 = arith.constant dense<0.000000e+00> : vector<1x128xf32>
      %53 = tpu.matmul %51, %52, %cst_27 {dimension_numbers = #tpu.dot_dimension_numbers<[1], [0], [0], [1], [0, 0, 1, 1], [], []>, precision = #tpu.contract_precision<fp32>} : vector<1x128xf32>, vector<128x128xf32>, vector<1x128xf32> -> vector<1x128xf32>
      %54 = arith.addf %53, %2 : vector<1x128xf32>
      %cst_28 = arith.constant 0.000000e+00 : f32
      %55 = vector.broadcast %cst_28 : f32 to vector<1x128xf32>
      %56 = arith.maximumf %54, %55 : vector<1x128xf32>
      %c0_29 = arith.constant 0 : index
      %c0_30 = arith.constant 0 : index
      %57 = vector.load %arg6[%c0_29, %c0_30] : memref<1x128xf32, #tpu.memory_space<vmem>>, vector<1x128xf32>
      tpu.vector_store %arg6[%c0_29, %c0_30], %56 {strides = array<i32>} : memref<1x128xf32, #tpu.memory_space<vmem>>, vector<1x128xf32>,
    } else {
    }
    %c0_3 = arith.constant 0 : index
    %9 = memref.load %arg0[%c0_3] : memref<2xi32, #tpu.memory_space<smem>>
    %c0_i32_4 = arith.constant 0 : i32
    %10 = arith.cmpi ne, %9, %c0_i32_4 : i32
    %11 = arith.extui %10 : i1 to i32
    %c0_i32_5 = arith.constant 0 : i32
    %12 = arith.cmpi ne, %11, %c0_i32_5 : i32
    scf.if %12 {
      %c0_17 = arith.constant 0 : index
      %c0_18 = arith.constant 0 : index
      %33 = vector.load %arg6[%c0_17, %c0_18] : memref<1x128xf32, #tpu.memory_space<vmem>>, vector<1x128xf32>
      tpu.vector_store %arg6[%c0_17, %c0_18], %3 {strides = array<i32>} : memref<1x128xf32, #tpu.memory_space<vmem>>, vector<1x128xf32>,
    } else {
    }
    %c0_6 = arith.constant 0 : index
    %c256 = arith.constant 256 : index
    %13 = vector.load %arg2[%c0_6, %c256] : memref<128x384xf32, #tpu.memory_space<vmem>>, vector<128x128xf32>
    %c0_7 = arith.constant 0 : index
    %c0_8 = arith.constant 0 : index
    %14 = vector.load %arg6[%c0_7, %c0_8] : memref<1x128xf32, #tpu.memory_space<vmem>>, vector<1x128xf32>
    %cst = arith.constant dense<0.000000e+00> : vector<1x128xf32>
    %15 = tpu.matmul %14, %13, %cst {dimension_numbers = #tpu.dot_dimension_numbers<[1], [0], [0], [1], [0, 0, 1, 1], [], []>, precision = #tpu.contract_precision<fp32>} : vector<1x128xf32>, vector<128x128xf32>, vector<1x128xf32> -> vector<1x128xf32>
    %16 = arith.addf %15, %4 : vector<1x128xf32>
    %c0_9 = arith.constant 0 : index
    %c0_10 = arith.constant 0 : index
    %17 = vector.load %arg4[%c0_9, %c0_10] : memref<1x128xf32, #tpu.memory_space<vmem>>, vector<1x128xf32>
    %cst_11 = arith.constant 0.000000e+00 : f32
    %18 = vector.broadcast %cst_11 : f32 to vector<1x128xf32>
    %19 = arith.cmpf ogt, %17, %18 : vector<1x128xf32>
    %cst_12 = arith.constant -1.000000e+30 : f32
    %20 = vector.broadcast %cst_12 : f32 to vector<1x128xf32>
    %21 = arith.select %19, %16, %20 : vector<1x128xi1>, vector<1x128xf32>
    %cst_13 = arith.constant dense<0xFF800000> : vector<1xf32>
    %22 = vector.multi_reduction <maximumf>, %21, %cst_13 [1] : vector<1x128xf32> to vector<1xf32>
    %23 = vector.shape_cast %22 : vector<1xf32> to vector<1x1xf32>
    %24 = vector.broadcast %23 : vector<1x1xf32> to vector<1x128xf32>
    %25 = arith.subf %21, %24 : vector<1x128xf32>
    %26 = math.exp %25 : vector<1x128xf32>
    %cst_14 = arith.constant dense<0.000000e+00> : vector<1xf32>
    %27 = vector.multi_reduction <add>, %26, %cst_14 [1] : vector<1x128xf32> to vector<1xf32>
    %28 = vector.shape_cast %27 : vector<1xf32> to vector<1x1xf32>
    %29 = tpu.reciprocal %28 : vector<1x1xf32> -> vector<1x1xf32>
    %30 = vector.broadcast %29 : vector<1x1xf32> to vector<1x128xf32>
    %31 = arith.mulf %26, %30 : vector<1x128xf32>
    %c0_15 = arith.constant 0 : index
    %c0_16 = arith.constant 0 : index
    %32 = vector.load %arg5[%c0_15, %c0_16] : memref<1x128xf32, #tpu.memory_space<vmem>>, vector<1x128xf32>
    tpu.vector_store %arg5[%c0_15, %c0_16], %31 {strides = array<i32>} : memref<1x128xf32, #tpu.memory_space<vmem>>, vector<1x128xf32>,
    return
  }
}

</mosaic_0001>

<llo_original>
// kernel: _forward_device.1
$region0: #{_forward_device.1}
  #allocation0 [shape = 'u32[]', space=smem, size = 0x4, offset = 0x4, fixed_abs, tag = 'smem constant byte address 0x4 - core index']
  #allocation1 [shape = 'u32[72,128]{1,0:T(1,128)}', space=vmem, size = 0x9000, scoped, tag = 'internal scratch']
  #allocation2 [shape = 'f32[1,128]{1,0:T(1,128)}', space=vmem, size = 0x200, scoped, tag = 'scratch operand']
  %s0 = inlined_call_operand.vmem [shape: s32[2], index: 0, kind: input, shape index: {}]
  %s1 = inlined_call_operand.vmem [shape: f32[8,128], index: 1, kind: input, shape index: {}]
  %s2 = inlined_call_operand.hbm [shape: f32[128,384], index: 2, kind: input, shape index: {}]
  %s3 = inlined_call_operand.vmem [shape: f32[8,128], index: 3, kind: input, shape index: {}]
  %s4 = inlined_call_operand.vmem [shape: f32[1,128], index: 4, kind: input, shape index: {}]
  %s5 = inlined_call_operand.vmem [shape: f32[1,128], index: 5, kind: output, shape index: {}]
  %s6 = sld [smem:[#allocation0]]
  $region46: #{_forward_device.1} parent=0
    _
  %s8 = ssub.s32 1, %s6
  %s9 = scalar_select 0, %s8, %s6
  $region1: #{_forward_device.1} parent=0
    #allocation3 [shape = 'u8[512]{0}', space=smem, size = 0x200, scoped, tag = 'input window, operand 0, single buffered']
    #allocation4 [shape = 's32[1]{0}', space=sflag, size = 0x4, scoped, tag = 'scoped memory for _forward_device.1']
    #allocation5 [shape = 's32[1]{0}', space=sflag, size = 0x4, scoped, tag = 'scoped memory for _forward_device.1']
    #allocation6 [shape = 'u8[196608]{0}', space=vmem, size = 0x30000, scoped, tag = 'input window, operand 2, single buffered']
    %10 = vsyncpa [#allocation5], 0
    %11 = vsyncpa [#allocation4], 0
    // Predicated region
    $region2: #{_forward_device.1} parent=1 // pred_check
      _
    $region3: #{_forward_device.1} parent=1 // pred_check_branch
      %13 = sbr.rel (0) target = $region5
    $region4: #{_forward_device.1} parent=1 // pred_region
      %15 = vsyncadd [#allocation5], 0
      %s17 = sshll.u32 %s0, 4
      %s18 = int_to_ptr.vmem [resolvable:$true] %s17
      %20 = dma.vmem_to_smem %s18, 16, [#allocation3], [#allocation5]
    $region5: #{_forward_device.1} parent=1 // pred_fallthru
      _
    // Predicated region
    $region6: #{_forward_device.1} parent=1 // pred_check
      _
    $region7: #{_forward_device.1} parent=1 // pred_check_branch
      %22 = sbr.rel (0) target = $region9
    $region8: #{_forward_device.1} parent=1 // pred_region
      _
    $region9: #{_forward_device.1} parent=1 // pred_fallthru
      _
    // Predicated region
    $region10: #{_forward_device.1} parent=1 // pred_check
      _
    $region11: #{_forward_device.1} parent=1 // pred_check_branch
      %24 = sbr.rel (0) target = $region13
    $region12: #{_forward_device.1} parent=1 // pred_region
      %26 = vsyncadd [#allocation4], 0
      %s27 = sshll.u32 %s2, 4
      %s28 = int_to_ptr.hbm [resolvable:$true] %s27
      %s29 = sshll.u32 [#allocation6], 4
      %s30 = int_to_ptr.vmem [resolvable:$true] %s29
      %35 = dma.hbm_to_vmem [thread:$0]  %s28, 6144, %s30, [#allocation4], 384, 384, 24
    $region13: #{_forward_device.1} parent=1 // pred_fallthru
      _
    // Predicated region
    $region14: #{_forward_device.1} parent=1 // pred_check
      _
    $region15: #{_forward_device.1} parent=1 // pred_check_branch
      %37 = sbr.rel (0) target = $region17
    $region16: #{_forward_device.1} parent=1 // pred_region
      _
    $region17: #{_forward_device.1} parent=1 // pred_fallthru
      _
    // Predicated region
    $region18: #{_forward_device.1} parent=1 // pred_check
      _
    $region19: #{_forward_device.1} parent=1 // pred_check_branch
      %39 = sbr.rel (0) target = $region21
    $region20: #{_forward_device.1} parent=1 // pred_region
      _
    $region21: #{_forward_device.1} parent=1 // pred_fallthru
      _
    // Predicated region
    $region22: #{_forward_device.1} parent=1 // pred_check
      _
    $region23: #{_forward_device.1} parent=1 // pred_check_branch
      %41 = sbr.rel (0) target = $region25
    $region24: #{_forward_device.1} parent=1 // pred_region
      %43 = dma.done [#allocation5], 16
    $region25: #{_forward_device.1} parent=1 // pred_fallthru
      _
    // Predicated region
    $region26: #{_forward_device.1} parent=1 // pred_check
      _
    $region27: #{_forward_device.1} parent=1 // pred_check_branch
      %45 = sbr.rel (0) target = $region29
    $region28: #{_forward_device.1} parent=1 // pred_region
      %47 = dma.done [#allocation4], 6144
    $region29: #{_forward_device.1} parent=1 // pred_fallthru
      _
    %48 = sfence
    %v49 = vld [vmem:[%s3] sm:$0xff]
    %s50 = sld [smem:[#allocation3]]
    %p51 = scmp.eq.s32.totalorder %s50, 0
    // Predicated region
    $region30: #{_forward_device.1} parent=1 // pred_check
      %p52 = pneg %p51
    $region31: #{_forward_device.1} parent=1 // pred_check_branch
      %54 = sbr.rel (%p52) target = $region33
    $region32: #{_forward_device.1} parent=1 // pred_region
      %v55 = vld [vmem:[%s1] sm:$0xff]
      %v56 = vld [vmem:[#allocation6] sm:$0xff]
      %v57 = vld [vmem:[#allocation6 + $0x18] sm:$0xff]
      %v58 = vld [vmem:[#allocation6 + $0x30] sm:$0xff]
      %v59 = vld [vmem:[#allocation6 + $0x48] sm:$0xff]
      %v60 = vld [vmem:[#allocation6 + $0x60] sm:$0xff]
      %v61 = vld [vmem:[#allocation6 + $0x78] sm:$0xff]
      %v62 = vld [vmem:[#allocation6 + $0x90] sm:$0xff]
      %v63 = vld [vmem:[#allocation6 + $0xa8] sm:$0xff]
      %v64 = vld [vmem:[#allocation6 + $0xc0] sm:$0xff]
      %v65 = vld [vmem:[#allocation6 + $0xd8] sm:$0xff]
      %v66 = vld [vmem:[#allocation6 + $0xf0] sm:$0xff]
      %v67 = vld [vmem:[#allocation6 + $0x108] sm:$0xff]
      %v68 = vld [vmem:[#allocation6 + $0x120] sm:$0xff]
      %v69 = vld [vmem:[#allocation6 + $0x138] sm:$0xff]
      %v70 = vld [vmem:[#allocation6 + $0x150] sm:$0xff]
      %v71 = vld [vmem:[#allocation6 + $0x168] sm:$0xff]
      %v72 = vperm.slane %v49, 0
      %v73 = vand.u32 %v71, 4294901760
      %74 = vmatpush.msra.mxu0 %v73
      %v75 = vand.u32 %v70, 4294901760
      %76 = vmatpush.msra.mxu0 %v75
      %v77 = vand.u32 %v69, 4294901760
      %78 = vmatpush.msra.mxu0 %v77
      %v79 = vand.u32 %v68, 4294901760
      %80 = vmatpush.msra.mxu0 %v79
      %v81 = vand.u32 %v67, 4294901760
      %82 = vmatpush.msra.mxu0 %v81
      %v83 = vand.u32 %v66, 4294901760
      %84 = vmatpush.msra.mxu0 %v83
      %v85 = vand.u32 %v65, 4294901760
      %86 = vmatpush.msra.mxu0 %v85
      %v87 = vand.u32 %v64, 4294901760
      %88 = vmatpush.msra.mxu0 %v87
      %v89 = vand.u32 %v63, 4294901760
      %90 = vmatpush.msra.mxu0 %v89
      %v91 = vand.u32 %v62, 4294901760
      %92 = vmatpush.msra.mxu0 %v91
      %v93 = vand.u32 %v61, 4294901760
      %94 = vmatpush.msra.mxu0 %v93
      %v95 = vand.u32 %v60, 4294901760
      %96 = vmatpush.msra.mxu0 %v95
      %v97 = vand.u32 %v59, 4294901760
      %98 = vmatpush.msra.mxu0 %v97
      %v99 = vand.u32 %v58, 4294901760
      %100 = vmatpush.msra.mxu0 %v99
      %v101 = vand.u32 %v57, 4294901760
      %102 = vmatpush.msra.mxu0 %v101
      %v103 = vand.u32 %v56, 4294901760
      %104 = vmatpush.msra.mxu0 %v103
      %v105 = vand.u32 %v55, 4294901760
      %v106 = vsub.f32 %v55, %v105
      %v107 = vand.u32 %v106, 4294901760
      %v108 = vsub.f32 %v106, %v107
      %v109 = vand.u32 %v108, 4294901760
      %110 = vmatmul.f32.gmra.mxu0 %v109
      %v111 = vpop.f32.mrf.mxu0
      %v112 = vadd.f32 %v72, %v111
      %113 = vdwg.mxu0
      %v114 = vand.u32 %v71, 4294901760
      %v115 = vsub.f32 %v71, %v114
      %v116 = vand.u32 %v115, 4294901760
      %v117 = vsub.f32 %v115, %v116
      %v118 = vand.u32 %v117, 4294901760
      %119 = vmatpush.msra.mxu0 %v118
      %v120 = vand.u32 %v70, 4294901760
      %v121 = vsub.f32 %v70, %v120
      %v122 = vand.u32 %v121, 4294901760
      %v123 = vsub.f32 %v121, %v122
      %v124 = vand.u32 %v123, 4294901760
      %125 = vmatpush.msra.mxu0 %v124
      %v126 = vand.u32 %v69, 4294901760
      %v127 = vsub.f32 %v69, %v126
      %v128 = vand.u32 %v127, 4294901760
      %v129 = vsub.f32 %v127, %v128
      %v130 = vand.u32 %v129, 4294901760
      %131 = vmatpush.msra.mxu0 %v130
      %v132 = vand.u32 %v68, 4294901760
      %v133 = vsub.f32 %v68, %v132
      %v134 = vand.u32 %v133, 4294901760
      %v135 = vsub.f32 %v133, %v134
      %v136 = vand.u32 %v135, 4294901760
      %137 = vmatpush.msra.mxu0 %v136
      %v138 = vand.u32 %v67, 4294901760
      %v139 = vsub.f32 %v67, %v138
      %v140 = vand.u32 %v139, 4294901760
      %v141 = vsub.f32 %v139, %v140
      %v142 = vand.u32 %v141, 4294901760
      %143 = vmatpush.msra.mxu0 %v142
      %v144 = vand.u32 %v66, 4294901760
      %v145 = vsub.f32 %v66, %v144
      %v146 = vand.u32 %v145, 4294901760
      %v147 = vsub.f32 %v145, %v146
      %v148 = vand.u32 %v147, 4294901760
      %149 = vmatpush.msra.mxu0 %v148
      %v150 = vand.u32 %v65, 4294901760
      %v151 = vsub.f32 %v65, %v150
      %v152 = vand.u32 %v151, 4294901760
      %v153 = vsub.f32 %v151, %v152
      %v154 = vand.u32 %v153, 4294901760
      %155 = vmatpush.msra.mxu0 %v154
      %v156 = vand.u32 %v64, 4294901760
      %v157 = vsub.f32 %v64, %v156
      %v158 = vand.u32 %v157, 4294901760
      %v159 = vsub.f32 %v157, %v158
      %v160 = vand.u32 %v159, 4294901760
      %161 = vmatpush.msra.mxu0 %v160
      %v162 = vand.u32 %v63, 4294901760
      %v163 = vsub.f32 %v63, %v162
      %v164 = vand.u32 %v163, 4294901760
      %v165 = vsub.f32 %v163, %v164
      %v166 = vand.u32 %v165, 4294901760
      %167 = vmatpush.msra.mxu0 %v166
      %v168 = vand.u32 %v62, 4294901760
      %v169 = vsub.f32 %v62, %v168
      %v170 = vand.u32 %v169, 4294901760
      %v171 = vsub.f32 %v169, %v170
      %v172 = vand.u32 %v171, 4294901760
      %173 = vmatpush.msra.mxu0 %v172
      %v174 = vand.u32 %v61, 4294901760
      %v175 = vsub.f32 %v61, %v174
      %v176 = vand.u32 %v175, 4294901760
      %v177 = vsub.f32 %v175, %v176
      %v178 = vand.u32 %v177, 4294901760
      %179 = vmatpush.msra.mxu0 %v178
      %v180 = vand.u32 %v60, 4294901760
      %v181 = vsub.f32 %v60, %v180
      %v182 = vand.u32 %v181, 4294901760
      %v183 = vsub.f32 %v181, %v182
      %v184 = vand.u32 %v183, 4294901760
      %185 = vmatpush.msra.mxu0 %v184
      %v186 = vand.u32 %v59, 4294901760
      %v187 = vsub.f32 %v59, %v186
      %v188 = vand.u32 %v187, 4294901760
      %v189 = vsub.f32 %v187, %v188
      %v190 = vand.u32 %v189, 4294901760
      %191 = vmatpush.msra.mxu0 %v190
      %v192 = vand.u32 %v58, 4294901760
      %v193 = vsub.f32 %v58, %v192
      %v194 = vand.u32 %v193, 4294901760
      %v195 = vsub.f32 %v193, %v194
      %v196 = vand.u32 %v195, 4294901760
      %197 = vmatpush.msra.mxu0 %v196
      %v198 = vand.u32 %v57, 4294901760
      %v199 = vsub.f32 %v57, %v198
      %v200 = vand.u32 %v199, 4294901760
      %v201 = vsub.f32 %v199, %v200
      %v202 = vand.u32 %v201, 4294901760
      %203 = vmatpush.msra.mxu0 %v202
      %v204 = vand.u32 %v56, 4294901760
      %v205 = vsub.f32 %v56, %v204
      %v206 = vand.u32 %v205, 4294901760
      %v207 = vsub.f32 %v205, %v206
      %v208 = vand.u32 %v207, 4294901760
      %209 = vmatpush.msra.mxu0 %v208
      %v210 = vand.u32 %v55, 4294901760
      %211 = vmatmul.f32.gmra.mxu0 %v210
      %v212 = vpop.f32.mrf.mxu0
      %v213 = vadd.f32 %v112, %v212
      %214 = vdwg.mxu0
      %v215 = vand.u32 %v71, 4294901760
      %v216 = vsub.f32 %v71, %v215
      %217 = vmatpush.msra.mxu0 %v216
      %v218 = vand.u32 %v70, 4294901760
      %v219 = vsub.f32 %v70, %v218
      %220 = vmatpush.msra.mxu0 %v219
      %v221 = vand.u32 %v69, 4294901760
      %v222 = vsub.f32 %v69, %v221
      %223 = vmatpush.msra.mxu0 %v222
      %v224 = vand.u32 %v68, 4294901760
      %v225 = vsub.f32 %v68, %v224
      %226 = vmatpush.msra.mxu0 %v225
      %v227 = vand.u32 %v67, 4294901760
      %v228 = vsub.f32 %v67, %v227
      %229 = vmatpush.msra.mxu0 %v228
      %v230 = vand.u32 %v66, 4294901760
      %v231 = vsub.f32 %v66, %v230
      %232 = vmatpush.msra.mxu0 %v231
      %v233 = vand.u32 %v65, 4294901760
      %v234 = vsub.f32 %v65, %v233
      %235 = vmatpush.msra.mxu0 %v234
      %v236 = vand.u32 %v64, 4294901760
      %v237 = vsub.f32 %v64, %v236
      %238 = vmatpush.msra.mxu0 %v237
      %v239 = vand.u32 %v63, 4294901760
      %v240 = vsub.f32 %v63, %v239
      %241 = vmatpush.msra.mxu0 %v240
      %v242 = vand.u32 %v62, 4294901760
      %v243 = vsub.f32 %v62, %v242
      %244 = vmatpush.msra.mxu0 %v243
      %v245 = vand.u32 %v61, 4294901760
      %v246 = vsub.f32 %v61, %v245
      %247 = vmatpush.msra.mxu0 %v246
      %v248 = vand.u32 %v60, 4294901760
      %v249 = vsub.f32 %v60, %v248
      %250 = vmatpush.msra.mxu0 %v249
      %v251 = vand.u32 %v59, 4294901760
      %v252 = vsub.f32 %v59, %v251
      %253 = vmatpush.msra.mxu0 %v252
      %v254 = vand.u32 %v58, 4294901760
      %v255 = vsub.f32 %v58, %v254
      %256 = vmatpush.msra.mxu0 %v255
      %v257 = vand.u32 %v57, 4294901760
      %v258 = vsub.f32 %v57, %v257
      %259 = vmatpush.msra.mxu0 %v258
      %v260 = vand.u32 %v56, 4294901760
      %v261 = vsub.f32 %v56, %v260
      %262 = vmatpush.msra.mxu0 %v261
      %v263 = vand.u32 %v55, 4294901760
      %v264 = vsub.f32 %v55, %v263
      %265 = vmatmul.f32.gmra.mxu0 %v264
      %v266 = vpop.f32.mrf.mxu0
      %v267 = vadd.f32 %v213, %v266
      %268 = vdwg.mxu0
      %v269 = vand.u32 %v71, 4294901760
      %270 = vmatpush.msra.mxu0 %v269
      %v271 = vand.u32 %v70, 4294901760
      %272 = vmatpush.msra.mxu0 %v271
      %v273 = vand.u32 %v69, 4294901760
      %274 = vmatpush.msra.mxu0 %v273
      %v275 = vand.u32 %v68, 4294901760
      %276 = vmatpush.msra.mxu0 %v275
      %v277 = vand.u32 %v67, 4294901760
      %278 = vmatpush.msra.mxu0 %v277
      %v279 = vand.u32 %v66, 4294901760
      %280 = vmatpush.msra.mxu0 %v279
      %v281 = vand.u32 %v65, 4294901760
      %282 = vmatpush.msra.mxu0 %v281
      %v283 = vand.u32 %v64, 4294901760
      %284 = vmatpush.msra.mxu0 %v283
      %v285 = vand.u32 %v63, 4294901760
      %286 = vmatpush.msra.mxu0 %v285
      %v287 = vand.u32 %v62, 4294901760
      %288 = vmatpush.msra.mxu0 %v287
      %v289 = vand.u32 %v61, 4294901760
      %290 = vmatpush.msra.mxu0 %v289
      %v291 = vand.u32 %v60, 4294901760
      %292 = vmatpush.msra.mxu0 %v291
      %v293 = vand.u32 %v59, 4294901760
      %294 = vmatpush.msra.mxu0 %v293
      %v295 = vand.u32 %v58, 4294901760
      %296 = vmatpush.msra.mxu0 %v295
      %v297 = vand.u32 %v57, 4294901760
      %298 = vmatpush.msra.mxu0 %v297
      %v299 = vand.u32 %v56, 4294901760
      %300 = vmatpush.msra.mxu0 %v299
      %v301 = vand.u32 %v55, 4294901760
      %v302 = vsub.f32 %v55, %v301
      %v303 = vand.u32 %v302, 4294901760
      %304 = vmatmul.f32.gmra.mxu0 %v303
      %v305 = vpop.f32.mrf.mxu0
      %v306 = vadd.f32 %v267, %v305
      %307 = vdwg.mxu0
      %v308 = vand.u32 %v71, 4294901760
      %v309 = vsub.f32 %v71, %v308
      %v310 = vand.u32 %v309, 4294901760
      %311 = vmatpush.msra.mxu0 %v310
      %v312 = vand.u32 %v70, 4294901760
      %v313 = vsub.f32 %v70, %v312
      %v314 = vand.u32 %v313, 4294901760
      %315 = vmatpush.msra.mxu0 %v314
      %v316 = vand.u32 %v69, 4294901760
      %v317 = vsub.f32 %v69, %v316
      %v318 = vand.u32 %v317, 4294901760
      %319 = vmatpush.msra.mxu0 %v318
      %v320 = vand.u32 %v68, 4294901760
      %v321 = vsub.f32 %v68, %v320
      %v322 = vand.u32 %v321, 4294901760
      %323 = vmatpush.msra.mxu0 %v322
      %v324 = vand.u32 %v67, 4294901760
      %v325 = vsub.f32 %v67, %v324
      %v326 = vand.u32 %v325, 4294901760
      %327 = vmatpush.msra.mxu0 %v326
      %v328 = vand.u32 %v66, 4294901760
      %v329 = vsub.f32 %v66, %v328
      %v330 = vand.u32 %v329, 4294901760
      %331 = vmatpush.msra.mxu0 %v330
      %v332 = vand.u32 %v65, 4294901760
      %v333 = vsub.f32 %v65, %v332
      %v334 = vand.u32 %v333, 4294901760
      %335 = vmatpush.msra.mxu0 %v334
      %v336 = vand.u32 %v64, 4294901760
      %v337 = vsub.f32 %v64, %v336
      %v338 = vand.u32 %v337, 4294901760
      %339 = vmatpush.msra.mxu0 %v338
      %v340 = vand.u32 %v63, 4294901760
      %v341 = vsub.f32 %v63, %v340
      %v342 = vand.u32 %v341, 4294901760
      %343 = vmatpush.msra.mxu0 %v342
      %v344 = vand.u32 %v62, 4294901760
      %v345 = vsub.f32 %v62, %v344
      %v346 = vand.u32 %v345, 4294901760
      %347 = vmatpush.msra.mxu0 %v346
      %v348 = vand.u32 %v61, 4294901760
      %v349 = vsub.f32 %v61, %v348
      %v350 = vand.u32 %v349, 4294901760
      %351 = vmatpush.msra.mxu0 %v350
      %v352 = vand.u32 %v60, 4294901760
      %v353 = vsub.f32 %v60, %v352
      %v354 = vand.u32 %v353, 4294901760
      %355 = vmatpush.msra.mxu0 %v354
      %v356 = vand.u32 %v59, 4294901760
      %v357 = vsub.f32 %v59, %v356
      %v358 = vand.u32 %v357, 4294901760
      %359 = vmatpush.msra.mxu0 %v358
      %v360 = vand.u32 %v58, 4294901760
      %v361 = vsub.f32 %v58, %v360
      %v362 = vand.u32 %v361, 4294901760
      %363 = vmatpush.msra.mxu0 %v362
      %v364 = vand.u32 %v57, 4294901760
      %v365 = vsub.f32 %v57, %v364
      %v366 = vand.u32 %v365, 4294901760
      %367 = vmatpush.msra.mxu0 %v366
      %v368 = vand.u32 %v56, 4294901760
      %v369 = vsub.f32 %v56, %v368
      %v370 = vand.u32 %v369, 4294901760
      %371 = vmatpush.msra.mxu0 %v370
      %v372 = vand.u32 %v55, 4294901760
      %373 = vmatmul.f32.gmra.mxu0 %v372
      %v374 = vpop.f32.mrf.mxu0
      %v375 = vadd.f32 %v306, %v374
      %376 = vdwg.mxu0
      %v377 = vand.u32 %v71, 4294901760
      %378 = vmatpush.msra.mxu0 %v377
      %v379 = vand.u32 %v70, 4294901760
      %380 = vmatpush.msra.mxu0 %v379
      %v381 = vand.u32 %v69, 4294901760
      %382 = vmatpush.msra.mxu0 %v381
      %v383 = vand.u32 %v68, 4294901760
      %384 = vmatpush.msra.mxu0 %v383
      %v385 = vand.u32 %v67, 4294901760
      %386 = vmatpush.msra.mxu0 %v385
      %v387 = vand.u32 %v66, 4294901760
      %388 = vmatpush.msra.mxu0 %v387
      %v389 = vand.u32 %v65, 4294901760
      %390 = vmatpush.msra.mxu0 %v389
      %v391 = vand.u32 %v64, 4294901760
      %392 = vmatpush.msra.mxu0 %v391
      %v393 = vand.u32 %v63, 4294901760
      %394 = vmatpush.msra.mxu0 %v393
      %v395 = vand.u32 %v62, 4294901760
      %396 = vmatpush.msra.mxu0 %v395
      %v397 = vand.u32 %v61, 4294901760
      %398 = vmatpush.msra.mxu0 %v397
      %v399 = vand.u32 %v60, 4294901760
      %400 = vmatpush.msra.mxu0 %v399
      %v401 = vand.u32 %v59, 4294901760
      %402 = vmatpush.msra.mxu0 %v401
      %v403 = vand.u32 %v58, 4294901760
      %404 = vmatpush.msra.mxu0 %v403
      %v405 = vand.u32 %v57, 4294901760
      %406 = vmatpush.msra.mxu0 %v405
      %v407 = vand.u32 %v56, 4294901760
      %408 = vmatpush.msra.mxu0 %v407
      %v409 = vand.u32 %v55, 4294901760
      %410 = vmatmul.f32.gmra.mxu0 %v409
      %v411 = vpop.f32.mrf.mxu0
      %v412 = vadd.f32 %v375, %v411
      %413 = vdwg.mxu0
      %v414 = vmax.f32 %v412, 0.0
      %s415 = sld [smem:[#allocation3 + $0x1]]
      %v416 = vlaneseq
      %v417 = vshrl.u32 %v416, 7
      %v418 = vstv %s415
      %vm419 = vcmp.lt.s32.totalorder %v417, %v418
      %v420 = vsel %vm419, %v414, 0.0
      %v421 = vrot.slane %v420, 4
      %v422 = vadd.f32 %v420, %v421
      %v423 = vrot.slane %v422, 2
      %v424 = vadd.f32 %v422, %v423
      %v425 = vrot.slane %v424, 1
      %v426 = vadd.f32 %v424, %v425
      %s427 = scvt.s32.f32 %s415
      %v428 = vstv %s427
      %v429 = vrcp.pop %v428
      %v430 = vmul.f32 %v428, %v429
      %v431 = vsub.f32 1.0, %v430
      %v432 = vmul.f32 %v429, %v431
      %v433 = vadd.f32 %v429, %v432
      %vm434 = vweird.f32 %v428
      %vm435 = vweird.f32 %v429
      %vm436 = vmor %vm434, %vm435
      %v437 = vsel %vm436, %v429, %v433
      %v438 = vand.u32 2147483647, %v428
      %vm439 = vcmp.eq.f32.partialorder %v438, 8.507059e+37
      %v440 = vand.u32 %v428, 2147483648
      %v441 = vor.u32 1.1754944e-38, %v440
      %v442 = vsel %vm439, %v441, %v437
      %s443 = vtos %v442
      %v444 = vstv %s443
      %v445 = vmul.f32 %v426, %v444
      %v446 = vld [vmem:[#allocation6 + $0x8] sm:$0xff]
      %v447 = vld [vmem:[#allocation6 + $0x20] sm:$0xff]
      %v448 = vld [vmem:[#allocation6 + $0x38] sm:$0xff]
      %v449 = vld [vmem:[#allocation6 + $0x50] sm:$0xff]
      %v450 = vld [vmem:[#allocation6 + $0x68] sm:$0xff]
      %v451 = vld [vmem:[#allocation6 + $0x80] sm:$0xff]
      %v452 = vld [vmem:[#allocation6 + $0x98] sm:$0xff]
      %v453 = vld [vmem:[#allocation6 + $0xb0] sm:$0xff]
      %v454 = vld [vmem:[#allocation6 + $0xc8] sm:$0xff]
      %v455 = vld [vmem:[#allocation6 + $0xe0] sm:$0xff]
      %v456 = vld [vmem:[#allocation6 + $0xf8] sm:$0xff]
      %v457 = vld [vmem:[#allocation6 + $0x110] sm:$0xff]
      %v458 = vld [vmem:[#allocation6 + $0x128] sm:$0xff]
      %v459 = vld [vmem:[#allocation6 + $0x140] sm:$0xff]
      %v460 = vld [vmem:[#allocation6 + $0x158] sm:$0xff]
      %v461 = vld [vmem:[#allocation6 + $0x170] sm:$0xff]
      %v463 = vrot.slane %v49, 1
      %v465 = vand.u32 %v461, 4294901760
      %466 = vmatpush.msra.mxu0 %v465
      %v467 = vand.u32 %v460, 4294901760
      %468 = vmatpush.msra.mxu0 %v467
      %v469 = vand.u32 %v459, 4294901760
      %470 = vmatpush.msra.mxu0 %v469
      %v471 = vand.u32 %v458, 4294901760
      %472 = vmatpush.msra.mxu0 %v471
      %v473 = vand.u32 %v457, 4294901760
      %474 = vmatpush.msra.mxu0 %v473
      %v475 = vand.u32 %v456, 4294901760
      %476 = vmatpush.msra.mxu0 %v475
      %v477 = vand.u32 %v455, 4294901760
      %478 = vmatpush.msra.mxu0 %v477
      %v479 = vand.u32 %v454, 4294901760
      %480 = vmatpush.msra.mxu0 %v479
      %v481 = vand.u32 %v453, 4294901760
      %482 = vmatpush.msra.mxu0 %v481
      %v483 = vand.u32 %v452, 4294901760
      %484 = vmatpush.msra.mxu0 %v483
      %v485 = vand.u32 %v451, 4294901760
      %486 = vmatpush.msra.mxu0 %v485
      %v487 = vand.u32 %v450, 4294901760
      %488 = vmatpush.msra.mxu0 %v487
      %v489 = vand.u32 %v449, 4294901760
      %490 = vmatpush.msra.mxu0 %v489
      %v491 = vand.u32 %v448, 4294901760
      %492 = vmatpush.msra.mxu0 %v491
      %v493 = vand.u32 %v447, 4294901760
      %494 = vmatpush.msra.mxu0 %v493
      %v495 = vand.u32 %v446, 4294901760
      %496 = vmatpush.msra.mxu0 %v495
      %v497 = vand.u32 %v445, 4294901760
      %v498 = vsub.f32 %v445, %v497
      %v499 = vand.u32 %v498, 4294901760
      %v500 = vsub.f32 %v498, %v499
      %v501 = vand.u32 %v500, 4294901760
      %502 = vmatmul.f32.gmra.mxu0 %v501
      %v503 = vpop.f32.mrf.mxu0
      %v504 = vadd.f32 %v463, %v503
      %505 = vdwg.mxu0
      %v506 = vand.u32 %v461, 4294901760
      %v507 = vsub.f32 %v461, %v506
      %v508 = vand.u32 %v507, 4294901760
      %v509 = vsub.f32 %v507, %v508
      %v510 = vand.u32 %v509, 4294901760
      %511 = vmatpush.msra.mxu0 %v510
      %v512 = vand.u32 %v460, 4294901760
      %v513 = vsub.f32 %v460, %v512
      %v514 = vand.u32 %v513, 4294901760
      %v515 = vsub.f32 %v513, %v514
      %v516 = vand.u32 %v515, 4294901760
      %517 = vmatpush.msra.mxu0 %v516
      %v518 = vand.u32 %v459, 4294901760
      %v519 = vsub.f32 %v459, %v518
      %v520 = vand.u32 %v519, 4294901760
      %v521 = vsub.f32 %v519, %v520
      %v522 = vand.u32 %v521, 4294901760
      %523 = vmatpush.msra.mxu0 %v522
      %v524 = vand.u32 %v458, 4294901760
      %v525 = vsub.f32 %v458, %v524
      %v526 = vand.u32 %v525, 4294901760
      %v527 = vsub.f32 %v525, %v526
      %v528 = vand.u32 %v527, 4294901760
      %529 = vmatpush.msra.mxu0 %v528
      %v530 = vand.u32 %v457, 4294901760
      %v531 = vsub.f32 %v457, %v530
      %v532 = vand.u32 %v531, 4294901760
      %v533 = vsub.f32 %v531, %v532
      %v534 = vand.u32 %v533, 4294901760
      %535 = vmatpush.msra.mxu0 %v534
      %v536 = vand.u32 %v456, 4294901760
      %v537 = vsub.f32 %v456, %v536
      %v538 = vand.u32 %v537, 4294901760
      %v539 = vsub.f32 %v537, %v538
      %v540 = vand.u32 %v539, 4294901760
      %541 = vmatpush.msra.mxu0 %v540
      %v542 = vand.u32 %v455, 4294901760
      %v543 = vsub.f32 %v455, %v542
      %v544 = vand.u32 %v543, 4294901760
      %v545 = vsub.f32 %v543, %v544
      %v546 = vand.u32 %v545, 4294901760
      %547 = vmatpush.msra.mxu0 %v546
      %v548 = vand.u32 %v454, 4294901760
      %v549 = vsub.f32 %v454, %v548
      %v550 = vand.u32 %v549, 4294901760
      %v551 = vsub.f32 %v549, %v550
      %v552 = vand.u32 %v551, 4294901760
      %553 = vmatpush.msra.mxu0 %v552
      %v554 = vand.u32 %v453, 4294901760
      %v555 = vsub.f32 %v453, %v554
      %v556 = vand.u32 %v555, 4294901760
      %v557 = vsub.f32 %v555, %v556
      %v558 = vand.u32 %v557, 4294901760
      %559 = vmatpush.msra.mxu0 %v558
      %v560 = vand.u32 %v452, 4294901760
      %v561 = vsub.f32 %v452, %v560
      %v562 = vand.u32 %v561, 4294901760
      %v563 = vsub.f32 %v561, %v562
      %v564 = vand.u32 %v563, 4294901760
      %565 = vmatpush.msra.mxu0 %v564
      %v566 = vand.u32 %v451, 4294901760
      %v567 = vsub.f32 %v451, %v566
      %v568 = vand.u32 %v567, 4294901760
      %v569 = vsub.f32 %v567, %v568
      %v570 = vand.u32 %v569, 4294901760
      %571 = vmatpush.msra.mxu0 %v570
      %v572 = vand.u32 %v450, 4294901760
      %v573 = vsub.f32 %v450, %v572
      %v574 = vand.u32 %v573, 4294901760
      %v575 = vsub.f32 %v573, %v574
      %v576 = vand.u32 %v575, 4294901760
      %577 = vmatpush.msra.mxu0 %v576
      %v578 = vand.u32 %v449, 4294901760
      %v579 = vsub.f32 %v449, %v578
      %v580 = vand.u32 %v579, 4294901760
      %v581 = vsub.f32 %v579, %v580
      %v582 = vand.u32 %v581, 4294901760
      %583 = vmatpush.msra.mxu0 %v582
      %v584 = vand.u32 %v448, 4294901760
      %v585 = vsub.f32 %v448, %v584
      %v586 = vand.u32 %v585, 4294901760
      %v587 = vsub.f32 %v585, %v586
      %v588 = vand.u32 %v587, 4294901760
      %589 = vmatpush.msra.mxu0 %v588
      %v590 = vand.u32 %v447, 4294901760
      %v591 = vsub.f32 %v447, %v590
      %v592 = vand.u32 %v591, 4294901760
      %v593 = vsub.f32 %v591, %v592
      %v594 = vand.u32 %v593, 4294901760
      %595 = vmatpush.msra.mxu0 %v594
      %v596 = vand.u32 %v446, 4294901760
      %v597 = vsub.f32 %v446, %v596
      %v598 = vand.u32 %v597, 4294901760
      %v599 = vsub.f32 %v597, %v598
      %v600 = vand.u32 %v599, 4294901760
      %601 = vmatpush.msra.mxu0 %v600
      %v602 = vand.u32 %v445, 4294901760
      %603 = vmatmul.f32.gmra.mxu0 %v602
      %v604 = vpop.f32.mrf.mxu0
      %v605 = vadd.f32 %v504, %v604
      %606 = vdwg.mxu0
      %v607 = vand.u32 %v461, 4294901760
      %v608 = vsub.f32 %v461, %v607
      %609 = vmatpush.msra.mxu0 %v608
      %v610 = vand.u32 %v460, 4294901760
      %v611 = vsub.f32 %v460, %v610
      %612 = vmatpush.msra.mxu0 %v611
      %v613 = vand.u32 %v459, 4294901760
      %v614 = vsub.f32 %v459, %v613
      %615 = vmatpush.msra.mxu0 %v614
      %v616 = vand.u32 %v458, 4294901760
      %v617 = vsub.f32 %v458, %v616
      %618 = vmatpush.msra.mxu0 %v617
      %v619 = vand.u32 %v457, 4294901760
      %v620 = vsub.f32 %v457, %v619
      %621 = vmatpush.msra.mxu0 %v620
      %v622 = vand.u32 %v456, 4294901760
      %v623 = vsub.f32 %v456, %v622
      %624 = vmatpush.msra.mxu0 %v623
      %v625 = vand.u32 %v455, 4294901760
      %v626 = vsub.f32 %v455, %v625
      %627 = vmatpush.msra.mxu0 %v626
      %v628 = vand.u32 %v454, 4294901760
      %v629 = vsub.f32 %v454, %v628
      %630 = vmatpush.msra.mxu0 %v629
      %v631 = vand.u32 %v453, 4294901760
      %v632 = vsub.f32 %v453, %v631
      %633 = vmatpush.msra.mxu0 %v632
      %v634 = vand.u32 %v452, 4294901760
      %v635 = vsub.f32 %v452, %v634
      %636 = vmatpush.msra.mxu0 %v635
      %v637 = vand.u32 %v451, 4294901760
      %v638 = vsub.f32 %v451, %v637
      %639 = vmatpush.msra.mxu0 %v638
      %v640 = vand.u32 %v450, 4294901760
      %v641 = vsub.f32 %v450, %v640
      %642 = vmatpush.msra.mxu0 %v641
      %v643 = vand.u32 %v449, 4294901760
      %v644 = vsub.f32 %v449, %v643
      %645 = vmatpush.msra.mxu0 %v644
      %v646 = vand.u32 %v448, 4294901760
      %v647 = vsub.f32 %v448, %v646
      %648 = vmatpush.msra.mxu0 %v647
      %v649 = vand.u32 %v447, 4294901760
      %v650 = vsub.f32 %v447, %v649
      %651 = vmatpush.msra.mxu0 %v650
      %v652 = vand.u32 %v446, 4294901760
      %v653 = vsub.f32 %v446, %v652
      %654 = vmatpush.msra.mxu0 %v653
      %v655 = vand.u32 %v445, 4294901760
      %v656 = vsub.f32 %v445, %v655
      %657 = vmatmul.f32.gmra.mxu0 %v656
      %v658 = vpop.f32.mrf.mxu0
      %v659 = vadd.f32 %v605, %v658
      %660 = vdwg.mxu0
      %v661 = vand.u32 %v461, 4294901760
      %662 = vmatpush.msra.mxu0 %v661
      %v663 = vand.u32 %v460, 4294901760
      %664 = vmatpush.msra.mxu0 %v663
      %v665 = vand.u32 %v459, 4294901760
      %666 = vmatpush.msra.mxu0 %v665
      %v667 = vand.u32 %v458, 4294901760
      %668 = vmatpush.msra.mxu0 %v667
      %v669 = vand.u32 %v457, 4294901760
      %670 = vmatpush.msra.mxu0 %v669
      %v671 = vand.u32 %v456, 4294901760
      %672 = vmatpush.msra.mxu0 %v671
      %v673 = vand.u32 %v455, 4294901760
      %674 = vmatpush.msra.mxu0 %v673
      %v675 = vand.u32 %v454, 4294901760
      %676 = vmatpush.msra.mxu0 %v675
      %v677 = vand.u32 %v453, 4294901760
      %678 = vmatpush.msra.mxu0 %v677
      %v679 = vand.u32 %v452, 4294901760
      %680 = vmatpush.msra.mxu0 %v679
      %v681 = vand.u32 %v451, 4294901760
      %682 = vmatpush.msra.mxu0 %v681
      %v683 = vand.u32 %v450, 4294901760
      %684 = vmatpush.msra.mxu0 %v683
      %v685 = vand.u32 %v449, 4294901760
      %686 = vmatpush.msra.mxu0 %v685
      %v687 = vand.u32 %v448, 4294901760
      %688 = vmatpush.msra.mxu0 %v687
      %v689 = vand.u32 %v447, 4294901760
      %690 = vmatpush.msra.mxu0 %v689
      %v691 = vand.u32 %v446, 4294901760
      %692 = vmatpush.msra.mxu0 %v691
      %v693 = vand.u32 %v445, 4294901760
      %v694 = vsub.f32 %v445, %v693
      %v695 = vand.u32 %v694, 4294901760
      %696 = vmatmul.f32.gmra.mxu0 %v695
      %v697 = vpop.f32.mrf.mxu0
      %v698 = vadd.f32 %v659, %v697
      %699 = vdwg.mxu0
      %v700 = vand.u32 %v461, 4294901760
      %v701 = vsub.f32 %v461, %v700
      %v702 = vand.u32 %v701, 4294901760
      %703 = vmatpush.msra.mxu0 %v702
      %v704 = vand.u32 %v460, 4294901760
      %v705 = vsub.f32 %v460, %v704
      %v706 = vand.u32 %v705, 4294901760
      %707 = vmatpush.msra.mxu0 %v706
      %v708 = vand.u32 %v459, 4294901760
      %v709 = vsub.f32 %v459, %v708
      %v710 = vand.u32 %v709, 4294901760
      %711 = vmatpush.msra.mxu0 %v710
      %v712 = vand.u32 %v458, 4294901760
      %v713 = vsub.f32 %v458, %v712
      %v714 = vand.u32 %v713, 4294901760
      %715 = vmatpush.msra.mxu0 %v714
      %v716 = vand.u32 %v457, 4294901760
      %v717 = vsub.f32 %v457, %v716
      %v718 = vand.u32 %v717, 4294901760
      %719 = vmatpush.msra.mxu0 %v718
      %v720 = vand.u32 %v456, 4294901760
      %v721 = vsub.f32 %v456, %v720
      %v722 = vand.u32 %v721, 4294901760
      %723 = vmatpush.msra.mxu0 %v722
      %v724 = vand.u32 %v455, 4294901760
      %v725 = vsub.f32 %v455, %v724
      %v726 = vand.u32 %v725, 4294901760
      %727 = vmatpush.msra.mxu0 %v726
      %v728 = vand.u32 %v454, 4294901760
      %v729 = vsub.f32 %v454, %v728
      %v730 = vand.u32 %v729, 4294901760
      %731 = vmatpush.msra.mxu0 %v730
      %v732 = vand.u32 %v453, 4294901760
      %v733 = vsub.f32 %v453, %v732
      %v734 = vand.u32 %v733, 4294901760
      %735 = vmatpush.msra.mxu0 %v734
      %v736 = vand.u32 %v452, 4294901760
      %v737 = vsub.f32 %v452, %v736
      %v738 = vand.u32 %v737, 4294901760
      %739 = vmatpush.msra.mxu0 %v738
      %v740 = vand.u32 %v451, 4294901760
      %v741 = vsub.f32 %v451, %v740
      %v742 = vand.u32 %v741, 4294901760
      %743 = vmatpush.msra.mxu0 %v742
      %v744 = vand.u32 %v450, 4294901760
      %v745 = vsub.f32 %v450, %v744
      %v746 = vand.u32 %v745, 4294901760
      %747 = vmatpush.msra.mxu0 %v746
      %v748 = vand.u32 %v449, 4294901760
      %v749 = vsub.f32 %v449, %v748
      %v750 = vand.u32 %v749, 4294901760
      %751 = vmatpush.msra.mxu0 %v750
      %v752 = vand.u32 %v448, 4294901760
      %v753 = vsub.f32 %v448, %v752
      %v754 = vand.u32 %v753, 4294901760
      %755 = vmatpush.msra.mxu0 %v754
      %v756 = vand.u32 %v447, 4294901760
      %v757 = vsub.f32 %v447, %v756
      %v758 = vand.u32 %v757, 4294901760
      %759 = vmatpush.msra.mxu0 %v758
      %v760 = vand.u32 %v446, 4294901760
      %v761 = vsub.f32 %v446, %v760
      %v762 = vand.u32 %v761, 4294901760
      %763 = vmatpush.msra.mxu0 %v762
      %v764 = vand.u32 %v445, 4294901760
      %765 = vmatmul.f32.gmra.mxu0 %v764
      %v766 = vpop.f32.mrf.mxu0
      %v767 = vadd.f32 %v698, %v766
      %768 = vdwg.mxu0
      %v769 = vand.u32 %v461, 4294901760
      %770 = vmatpush.msra.mxu0 %v769
      %v771 = vand.u32 %v460, 4294901760
      %772 = vmatpush.msra.mxu0 %v771
      %v773 = vand.u32 %v459, 4294901760
      %774 = vmatpush.msra.mxu0 %v773
      %v775 = vand.u32 %v458, 4294901760
      %776 = vmatpush.msra.mxu0 %v775
      %v777 = vand.u32 %v457, 4294901760
      %778 = vmatpush.msra.mxu0 %v777
      %v779 = vand.u32 %v456, 4294901760
      %780 = vmatpush.msra.mxu0 %v779
      %v781 = vand.u32 %v455, 4294901760
      %782 = vmatpush.msra.mxu0 %v781
      %v783 = vand.u32 %v454, 4294901760
      %784 = vmatpush.msra.mxu0 %v783
      %v785 = vand.u32 %v453, 4294901760
      %786 = vmatpush.msra.mxu0 %v785
      %v787 = vand.u32 %v452, 4294901760
      %788 = vmatpush.msra.mxu0 %v787
      %v789 = vand.u32 %v451, 4294901760
      %790 = vmatpush.msra.mxu0 %v789
      %v791 = vand.u32 %v450, 4294901760
      %792 = vmatpush.msra.mxu0 %v791
      %v793 = vand.u32 %v449, 4294901760
      %794 = vmatpush.msra.mxu0 %v793
      %v795 = vand.u32 %v448, 4294901760
      %796 = vmatpush.msra.mxu0 %v795
      %v797 = vand.u32 %v447, 4294901760
      %798 = vmatpush.msra.mxu0 %v797
      %v799 = vand.u32 %v446, 4294901760
      %800 = vmatpush.msra.mxu0 %v799
      %v801 = vand.u32 %v445, 4294901760
      %802 = vmatmul.f32.gmra.mxu0 %v801
      %v803 = vpop.f32.mrf.mxu0
      %v804 = vadd.f32 %v767, %v803
      %805 = vdwg.mxu0
      %v806 = vmax.f32 %v804, 0.0
      %807 = vst [vmem:[#allocation2] sm:$0x1] %v806
    $region33: #{_forward_device.1} parent=1 // pred_fallthru
      _
    %s808 = sld [smem:[#allocation3]]
    %p809 = scmp.ne.s32.totalorder %s808, 0
    // Predicated region
    $region34: #{_forward_device.1} parent=1 // pred_check
      %p810 = pneg %p809
    $region35: #{_forward_device.1} parent=1 // pred_check_branch
      %812 = sbr.rel (%p810) target = $region37
    $region36: #{_forward_device.1} parent=1 // pred_region
      %813 = vst [vmem:[#allocation2 - $0x2] sm:$0x4] %v49
    $region37: #{_forward_device.1} parent=1 // pred_fallthru
      _
    %v814 = vld [vmem:[#allocation6 + $0x10] sm:$0xff]
    %v815 = vld [vmem:[#allocation6 + $0x28] sm:$0xff]
    %v816 = vld [vmem:[#allocation6 + $0x40] sm:$0xff]
    %v817 = vld [vmem:[#allocation6 + $0x58] sm:$0xff]
    %v818 = vld [vmem:[#allocation6 + $0x70] sm:$0xff]
    %v819 = vld [vmem:[#allocation6 + $0x88] sm:$0xff]
    %v820 = vld [vmem:[#allocation6 + $0xa0] sm:$0xff]
    %v821 = vld [vmem:[#allocation6 + $0xb8] sm:$0xff]
    %v822 = vld [vmem:[#allocation6 + $0xd0] sm:$0xff]
    %v823 = vld [vmem:[#allocation6 + $0xe8] sm:$0xff]
    %v824 = vld [vmem:[#allocation6 + $0x100] sm:$0xff]
    %v825 = vld [vmem:[#allocation6 + $0x118] sm:$0xff]
    %v826 = vld [vmem:[#allocation6 + $0x130] sm:$0xff]
    %v827 = vld [vmem:[#allocation6 + $0x148] sm:$0xff]
    %v828 = vld [vmem:[#allocation6 + $0x160] sm:$0xff]
    %v829 = vld [vmem:[#allocation6 + $0x178] sm:$0xff]
    %v830 = vld [vmem:[#allocation2] sm:$0x1]
    %v832 = vrot.slane %v49, 3
    %v834 = vand.u32 %v829, 4294901760
    %835 = vmatpush.msra.mxu0 %v834
    %v836 = vand.u32 %v828, 4294901760
    %837 = vmatpush.msra.mxu0 %v836
    %v838 = vand.u32 %v827, 4294901760
    %839 = vmatpush.msra.mxu0 %v838
    %v840 = vand.u32 %v826, 4294901760
    %841 = vmatpush.msra.mxu0 %v840
    %v842 = vand.u32 %v825, 4294901760
    %843 = vmatpush.msra.mxu0 %v842
    %v844 = vand.u32 %v824, 4294901760
    %845 = vmatpush.msra.mxu0 %v844
    %v846 = vand.u32 %v823, 4294901760
    %847 = vmatpush.msra.mxu0 %v846
    %v848 = vand.u32 %v822, 4294901760
    %849 = vmatpush.msra.mxu0 %v848
    %v850 = vand.u32 %v821, 4294901760
    %851 = vmatpush.msra.mxu0 %v850
    %v852 = vand.u32 %v820, 4294901760
    %853 = vmatpush.msra.mxu0 %v852
    %v854 = vand.u32 %v819, 4294901760
    %855 = vmatpush.msra.mxu0 %v854
    %v856 = vand.u32 %v818, 4294901760
    %857 = vmatpush.msra.mxu0 %v856
    %v858 = vand.u32 %v817, 4294901760
    %859 = vmatpush.msra.mxu0 %v858
    %v860 = vand.u32 %v816, 4294901760
    %861 = vmatpush.msra.mxu0 %v860
    %v862 = vand.u32 %v815, 4294901760
    %863 = vmatpush.msra.mxu0 %v862
    %v864 = vand.u32 %v814, 4294901760
    %865 = vmatpush.msra.mxu0 %v864
    %v866 = vand.u32 %v830, 4294901760
    %v867 = vsub.f32 %v830, %v866
    %v868 = vand.u32 %v867, 4294901760
    %v869 = vsub.f32 %v867, %v868
    %v870 = vand.u32 %v869, 4294901760
    %871 = vmatmul.f32.gmra.mxu0 %v870
    %v872 = vpop.f32.mrf.mxu0
    %v873 = vadd.f32 %v832, %v872
    %874 = vdwg.mxu0
    %v875 = vand.u32 %v829, 4294901760
    %v876 = vsub.f32 %v829, %v875
    %v877 = vand.u32 %v876, 4294901760
    %v878 = vsub.f32 %v876, %v877
    %v879 = vand.u32 %v878, 4294901760
    %880 = vmatpush.msra.mxu0 %v879
    %v881 = vand.u32 %v828, 4294901760
    %v882 = vsub.f32 %v828, %v881
    %v883 = vand.u32 %v882, 4294901760
    %v884 = vsub.f32 %v882, %v883
    %v885 = vand.u32 %v884, 4294901760
    %886 = vmatpush.msra.mxu0 %v885
    %v887 = vand.u32 %v827, 4294901760
    %v888 = vsub.f32 %v827, %v887
    %v889 = vand.u32 %v888, 4294901760
    %v890 = vsub.f32 %v888, %v889
    %v891 = vand.u32 %v890, 4294901760
    %892 = vmatpush.msra.mxu0 %v891
    %v893 = vand.u32 %v826, 4294901760
    %v894 = vsub.f32 %v826, %v893
    %v895 = vand.u32 %v894, 4294901760
    %v896 = vsub.f32 %v894, %v895
    %v897 = vand.u32 %v896, 4294901760
    %898 = vmatpush.msra.mxu0 %v897
    %v899 = vand.u32 %v825, 4294901760
    %v900 = vsub.f32 %v825, %v899
    %v901 = vand.u32 %v900, 4294901760
    %v902 = vsub.f32 %v900, %v901
    %v903 = vand.u32 %v902, 4294901760
    %904 = vmatpush.msra.mxu0 %v903
    %v905 = vand.u32 %v824, 4294901760
    %v906 = vsub.f32 %v824, %v905
    %v907 = vand.u32 %v906, 4294901760
    %v908 = vsub.f32 %v906, %v907
    %v909 = vand.u32 %v908, 4294901760
    %910 = vmatpush.msra.mxu0 %v909
    %v911 = vand.u32 %v823, 4294901760
    %v912 = vsub.f32 %v823, %v911
    %v913 = vand.u32 %v912, 4294901760
    %v914 = vsub.f32 %v912, %v913
    %v915 = vand.u32 %v914, 4294901760
    %916 = vmatpush.msra.mxu0 %v915
    %v917 = vand.u32 %v822, 4294901760
    %v918 = vsub.f32 %v822, %v917
    %v919 = vand.u32 %v918, 4294901760
    %v920 = vsub.f32 %v918, %v919
    %v921 = vand.u32 %v920, 4294901760
    %922 = vmatpush.msra.mxu0 %v921
    %v923 = vand.u32 %v821, 4294901760
    %v924 = vsub.f32 %v821, %v923
    %v925 = vand.u32 %v924, 4294901760
    %v926 = vsub.f32 %v924, %v925
    %v927 = vand.u32 %v926, 4294901760
    %928 = vmatpush.msra.mxu0 %v927
    %v929 = vand.u32 %v820, 4294901760
    %v930 = vsub.f32 %v820, %v929
    %v931 = vand.u32 %v930, 4294901760
    %v932 = vsub.f32 %v930, %v931
    %v933 = vand.u32 %v932, 4294901760
    %934 = vmatpush.msra.mxu0 %v933
    %v935 = vand.u32 %v819, 4294901760
    %v936 = vsub.f32 %v819, %v935
    %v937 = vand.u32 %v936, 4294901760
    %v938 = vsub.f32 %v936, %v937
    %v939 = vand.u32 %v938, 4294901760
    %940 = vmatpush.msra.mxu0 %v939
    %v941 = vand.u32 %v818, 4294901760
    %v942 = vsub.f32 %v818, %v941
    %v943 = vand.u32 %v942, 4294901760
    %v944 = vsub.f32 %v942, %v943
    %v945 = vand.u32 %v944, 4294901760
    %946 = vmatpush.msra.mxu0 %v945
    %v947 = vand.u32 %v817, 4294901760
    %v948 = vsub.f32 %v817, %v947
    %v949 = vand.u32 %v948, 4294901760
    %v950 = vsub.f32 %v948, %v949
    %v951 = vand.u32 %v950, 4294901760
    %952 = vmatpush.msra.mxu0 %v951
    %v953 = vand.u32 %v816, 4294901760
    %v954 = vsub.f32 %v816, %v953
    %v955 = vand.u32 %v954, 4294901760
    %v956 = vsub.f32 %v954, %v955
    %v957 = vand.u32 %v956, 4294901760
    %958 = vmatpush.msra.mxu0 %v957
    %v959 = vand.u32 %v815, 4294901760
    %v960 = vsub.f32 %v815, %v959
    %v961 = vand.u32 %v960, 4294901760
    %v962 = vsub.f32 %v960, %v961
    %v963 = vand.u32 %v962, 4294901760
    %964 = vmatpush.msra.mxu0 %v963
    %v965 = vand.u32 %v814, 4294901760
    %v966 = vsub.f32 %v814, %v965
    %v967 = vand.u32 %v966, 4294901760
    %v968 = vsub.f32 %v966, %v967
    %v969 = vand.u32 %v968, 4294901760
    %970 = vmatpush.msra.mxu0 %v969
    %v971 = vand.u32 %v830, 4294901760
    %972 = vmatmul.f32.gmra.mxu0 %v971
    %v973 = vpop.f32.mrf.mxu0
    %v974 = vadd.f32 %v873, %v973
    %975 = vdwg.mxu0
    %v976 = vand.u32 %v829, 4294901760
    %v977 = vsub.f32 %v829, %v976
    %978 = vmatpush.msra.mxu0 %v977
    %v979 = vand.u32 %v828, 4294901760
    %v980 = vsub.f32 %v828, %v979
    %981 = vmatpush.msra.mxu0 %v980
    %v982 = vand.u32 %v827, 4294901760
    %v983 = vsub.f32 %v827, %v982
    %984 = vmatpush.msra.mxu0 %v983
    %v985 = vand.u32 %v826, 4294901760
    %v986 = vsub.f32 %v826, %v985
    %987 = vmatpush.msra.mxu0 %v986
    %v988 = vand.u32 %v825, 4294901760
    %v989 = vsub.f32 %v825, %v988
    %990 = vmatpush.msra.mxu0 %v989
    %v991 = vand.u32 %v824, 4294901760
    %v992 = vsub.f32 %v824, %v991
    %993 = vmatpush.msra.mxu0 %v992
    %v994 = vand.u32 %v823, 4294901760
    %v995 = vsub.f32 %v823, %v994
    %996 = vmatpush.msra.mxu0 %v995
    %v997 = vand.u32 %v822, 4294901760
    %v998 = vsub.f32 %v822, %v997
    %999 = vmatpush.msra.mxu0 %v998
    %v1000 = vand.u32 %v821, 4294901760
    %v1001 = vsub.f32 %v821, %v1000
    %1002 = vmatpush.msra.mxu0 %v1001
    %v1003 = vand.u32 %v820, 4294901760
    %v1004 = vsub.f32 %v820, %v1003
    %1005 = vmatpush.msra.mxu0 %v1004
    %v1006 = vand.u32 %v819, 4294901760
    %v1007 = vsub.f32 %v819, %v1006
    %1008 = vmatpush.msra.mxu0 %v1007
    %v1009 = vand.u32 %v818, 4294901760
    %v1010 = vsub.f32 %v818, %v1009
    %1011 = vmatpush.msra.mxu0 %v1010
    %v1012 = vand.u32 %v817, 4294901760
    %v1013 = vsub.f32 %v817, %v1012
    %1014 = vmatpush.msra.mxu0 %v1013
    %v1015 = vand.u32 %v816, 4294901760
    %v1016 = vsub.f32 %v816, %v1015
    %1017 = vmatpush.msra.mxu0 %v1016
    %v1018 = vand.u32 %v815, 4294901760
    %v1019 = vsub.f32 %v815, %v1018
    %1020 = vmatpush.msra.mxu0 %v1019
    %v1021 = vand.u32 %v814, 4294901760
    %v1022 = vsub.f32 %v814, %v1021
    %1023 = vmatpush.msra.mxu0 %v1022
    %v1024 = vand.u32 %v830, 4294901760
    %v1025 = vsub.f32 %v830, %v1024
    %1026 = vmatmul.f32.gmra.mxu0 %v1025
    %v1027 = vpop.f32.mrf.mxu0
    %v1028 = vadd.f32 %v974, %v1027
    %1029 = vdwg.mxu0
    %v1030 = vand.u32 %v829, 4294901760
    %1031 = vmatpush.msra.mxu0 %v1030
    %v1032 = vand.u32 %v828, 4294901760
    %1033 = vmatpush.msra.mxu0 %v1032
    %v1034 = vand.u32 %v827, 4294901760
    %1035 = vmatpush.msra.mxu0 %v1034
    %v1036 = vand.u32 %v826, 4294901760
    %1037 = vmatpush.msra.mxu0 %v1036
    %v1038 = vand.u32 %v825, 4294901760
    %1039 = vmatpush.msra.mxu0 %v1038
    %v1040 = vand.u32 %v824, 4294901760
    %1041 = vmatpush.msra.mxu0 %v1040
    %v1042 = vand.u32 %v823, 4294901760
    %1043 = vmatpush.msra.mxu0 %v1042
    %v1044 = vand.u32 %v822, 4294901760
    %1045 = vmatpush.msra.mxu0 %v1044
    %v1046 = vand.u32 %v821, 4294901760
    %1047 = vmatpush.msra.mxu0 %v1046
    %v1048 = vand.u32 %v820, 4294901760
    %1049 = vmatpush.msra.mxu0 %v1048
    %v1050 = vand.u32 %v819, 4294901760
    %1051 = vmatpush.msra.mxu0 %v1050
    %v1052 = vand.u32 %v818, 4294901760
    %1053 = vmatpush.msra.mxu0 %v1052
    %v1054 = vand.u32 %v817, 4294901760
    %1055 = vmatpush.msra.mxu0 %v1054
    %v1056 = vand.u32 %v816, 4294901760
    %1057 = vmatpush.msra.mxu0 %v1056
    %v1058 = vand.u32 %v815, 4294901760
    %1059 = vmatpush.msra.mxu0 %v1058
    %v1060 = vand.u32 %v814, 4294901760
    %1061 = vmatpush.msra.mxu0 %v1060
    %v1062 = vand.u32 %v830, 4294901760
    %v1063 = vsub.f32 %v830, %v1062
    %v1064 = vand.u32 %v1063, 4294901760
    %1065 = vmatmul.f32.gmra.mxu0 %v1064
    %v1066 = vpop.f32.mrf.mxu0
    %v1067 = vadd.f32 %v1028, %v1066
    %1068 = vdwg.mxu0
    %v1069 = vand.u32 %v829, 4294901760
    %v1070 = vsub.f32 %v829, %v1069
    %v1071 = vand.u32 %v1070, 4294901760
    %1072 = vmatpush.msra.mxu0 %v1071
    %v1073 = vand.u32 %v828, 4294901760
    %v1074 = vsub.f32 %v828, %v1073
    %v1075 = vand.u32 %v1074, 4294901760
    %1076 = vmatpush.msra.mxu0 %v1075
    %v1077 = vand.u32 %v827, 4294901760
    %v1078 = vsub.f32 %v827, %v1077
    %v1079 = vand.u32 %v1078, 4294901760
    %1080 = vmatpush.msra.mxu0 %v1079
    %v1081 = vand.u32 %v826, 4294901760
    %v1082 = vsub.f32 %v826, %v1081
    %v1083 = vand.u32 %v1082, 4294901760
    %1084 = vmatpush.msra.mxu0 %v1083
    %v1085 = vand.u32 %v825, 4294901760
    %v1086 = vsub.f32 %v825, %v1085
    %v1087 = vand.u32 %v1086, 4294901760
    %1088 = vmatpush.msra.mxu0 %v1087
    %v1089 = vand.u32 %v824, 4294901760
    %v1090 = vsub.f32 %v824, %v1089
    %v1091 = vand.u32 %v1090, 4294901760
    %1092 = vmatpush.msra.mxu0 %v1091
    %v1093 = vand.u32 %v823, 4294901760
    %v1094 = vsub.f32 %v823, %v1093
    %v1095 = vand.u32 %v1094, 4294901760
    %1096 = vmatpush.msra.mxu0 %v1095
    %v1097 = vand.u32 %v822, 4294901760
    %v1098 = vsub.f32 %v822, %v1097
    %v1099 = vand.u32 %v1098, 4294901760
    %1100 = vmatpush.msra.mxu0 %v1099
    %v1101 = vand.u32 %v821, 4294901760
    %v1102 = vsub.f32 %v821, %v1101
    %v1103 = vand.u32 %v1102, 4294901760
    %1104 = vmatpush.msra.mxu0 %v1103
    %v1105 = vand.u32 %v820, 4294901760
    %v1106 = vsub.f32 %v820, %v1105
    %v1107 = vand.u32 %v1106, 4294901760
    %1108 = vmatpush.msra.mxu0 %v1107
    %v1109 = vand.u32 %v819, 4294901760
    %v1110 = vsub.f32 %v819, %v1109
    %v1111 = vand.u32 %v1110, 4294901760
    %1112 = vmatpush.msra.mxu0 %v1111
    %v1113 = vand.u32 %v818, 4294901760
    %v1114 = vsub.f32 %v818, %v1113
    %v1115 = vand.u32 %v1114, 4294901760
    %1116 = vmatpush.msra.mxu0 %v1115
    %v1117 = vand.u32 %v817, 4294901760
    %v1118 = vsub.f32 %v817, %v1117
    %v1119 = vand.u32 %v1118, 4294901760
    %1120 = vmatpush.msra.mxu0 %v1119
    %v1121 = vand.u32 %v816, 4294901760
    %v1122 = vsub.f32 %v816, %v1121
    %v1123 = vand.u32 %v1122, 4294901760
    %1124 = vmatpush.msra.mxu0 %v1123
    %v1125 = vand.u32 %v815, 4294901760
    %v1126 = vsub.f32 %v815, %v1125
    %v1127 = vand.u32 %v1126, 4294901760
    %1128 = vmatpush.msra.mxu0 %v1127
    %v1129 = vand.u32 %v814, 4294901760
    %v1130 = vsub.f32 %v814, %v1129
    %v1131 = vand.u32 %v1130, 4294901760
    %1132 = vmatpush.msra.mxu0 %v1131
    %v1133 = vand.u32 %v830, 4294901760
    %1134 = vmatmul.f32.gmra.mxu0 %v1133
    %v1135 = vpop.f32.mrf.mxu0
    %v1136 = vadd.f32 %v1067, %v1135
    %1137 = vdwg.mxu0
    %v1138 = vand.u32 %v829, 4294901760
    %1139 = vmatpush.msra.mxu0 %v1138
    %v1140 = vand.u32 %v828, 4294901760
    %1141 = vmatpush.msra.mxu0 %v1140
    %v1142 = vand.u32 %v827, 4294901760
    %1143 = vmatpush.msra.mxu0 %v1142
    %v1144 = vand.u32 %v826, 4294901760
    %1145 = vmatpush.msra.mxu0 %v1144
    %v1146 = vand.u32 %v825, 4294901760
    %1147 = vmatpush.msra.mxu0 %v1146
    %v1148 = vand.u32 %v824, 4294901760
    %1149 = vmatpush.msra.mxu0 %v1148
    %v1150 = vand.u32 %v823, 4294901760
    %1151 = vmatpush.msra.mxu0 %v1150
    %v1152 = vand.u32 %v822, 4294901760
    %1153 = vmatpush.msra.mxu0 %v1152
    %v1154 = vand.u32 %v821, 4294901760
    %1155 = vmatpush.msra.mxu0 %v1154
    %v1156 = vand.u32 %v820, 4294901760
    %1157 = vmatpush.msra.mxu0 %v1156
    %v1158 = vand.u32 %v819, 4294901760
    %1159 = vmatpush.msra.mxu0 %v1158
    %v1160 = vand.u32 %v818, 4294901760
    %1161 = vmatpush.msra.mxu0 %v1160
    %v1162 = vand.u32 %v817, 4294901760
    %1163 = vmatpush.msra.mxu0 %v1162
    %v1164 = vand.u32 %v816, 4294901760
    %1165 = vmatpush.msra.mxu0 %v1164
    %v1166 = vand.u32 %v815, 4294901760
    %1167 = vmatpush.msra.mxu0 %v1166
    %v1168 = vand.u32 %v814, 4294901760
    %1169 = vmatpush.msra.mxu0 %v1168
    %v1170 = vand.u32 %v830, 4294901760
    %1171 = vmatmul.f32.gmra.mxu0 %v1170
    %v1172 = vpop.f32.mrf.mxu0
    %v1173 = vadd.f32 %v1136, %v1172
    %1174 = vdwg.mxu0
    %v1175 = vld [vmem:[%s4] sm:$0x1]
    %vm1176 = vcmp.gt.f32.partialorder %v1175, 0.0
    %v1177 = vsel %vm1176, %v1173, -1e+30
    %vm1178 = vcmask 1040384
    %v1179 = vsel %vm1178, %v1177, -inf
    %1180 = vmax.xlane.f32.xlu0 %v1179
    %v1181 = vpop.xlane.xlu0 %1180
    %v1182 = vsub.f32 %v1177, %v1181
    %v1183 = vmul.f32 %v1182, 1.442695
    %v1184 = vpow.pop %v1183
    %v1185 = vsel %vm1178, %v1184, 0.0
    %1186 = vadd.xlane.f32.xlu0 %v1185
    %v1187 = vpop.xlane.xlu0 %1186
    %v1188 = vrcp.pop %v1187
    %v1189 = vmul.f32 %v1187, %v1188
    %v1190 = vsub.f32 1.0, %v1189
    %v1191 = vmul.f32 %v1188, %v1190
    %v1192 = vadd.f32 %v1188, %v1191
    %vm1193 = vweird.f32 %v1187
    %vm1194 = vweird.f32 %v1188
    %vm1195 = vmor %vm1193, %vm1194
    %v1196 = vsel %vm1195, %v1188, %v1192
    %v1197 = vand.u32 2147483647, %v1187
    %vm1198 = vcmp.eq.f32.partialorder %v1197, 8.507059e+37
    %v1199 = vand.u32 %v1187, 2147483648
    %v1200 = vor.u32 1.1754944e-38, %v1199
    %v1201 = vsel %vm1198, %v1200, %v1196
    %v1202 = vmul.f32 %v1184, %v1201
    %1203 = vst [vmem:[%s5] sm:$0x1] %v1202
    // Predicated region
    $region38: #{_forward_device.1} parent=1 // pred_check
      _
    $region39: #{_forward_device.1} parent=1 // pred_check_branch
      %1205 = sbr.rel (0) target = $region41
    $region40: #{_forward_device.1} parent=1 // pred_region
      _
    $region41: #{_forward_device.1} parent=1 // pred_fallthru
      _
    // Predicated region
    $region42: #{_forward_device.1} parent=1 // pred_check
      _
    $region43: #{_forward_device.1} parent=1 // pred_check_branch
      %1207 = sbr.rel (0) target = $region45
    $region44: #{_forward_device.1} parent=1 // pred_region
      _
    $region45: #{_forward_device.1} parent=1 // pred_fallthru
      _
    %1208 = vsyncpa [#allocation4], 1
    %1209 = vsyncpa [#allocation5], 1

</llo_original>
